<compile_context>
chip_gen: v6e
topology: v6e:2x2x1
jax: 0.10.0
libtpu: 0.0.40
codegen_flags: <defaults>
</compile_context>

<pallas_src>
import functools

import jax
import jax.numpy as jnp
from jax import lax
from jax.experimental import pallas as pl
from jax.experimental.pallas import tpu as pltpu

EPS = 1e-5


def _round_up(n, m):
    return ((n + m - 1) // m) * m


def _single_tensorcore_chip():
    """True on single-TC chips (v5e/v6e) -> fold batch into the lane axis.
    On v7x (2 TensorCores per chip) keep a parallel batch grid instead."""
    try:
        kind = jax.devices()[0].device_kind.lower()
    except Exception:
        return True
    return not ("v7" in kind or "7x" in kind)


def _residual_block_kernel(
    x_ref,      # (Cin_p, N)          raw input (f32), channels x (batch*)pixels
    m_ref,      # (9, 1, N)           hoisted 3x3 border masks (f32, 0/1)
    s1_ref,     # (Cin_p, 1)          BN1 scale
    t1_ref,     # (Cin_p, 1)          BN1 shift
    w1_ref,     # (Cint_p, 9*Cin_p)   conv1 weights, BN2 scale folded in
    t2_ref,     # (Cint_p, 1)         BN2 shift (post-conv1 bias)
    w2_ref,     # (Cout, 9*Cint_p)    conv2 weights
    wsc_ref,    # (Cout, Cin_p)       1x1 shortcut weights (f32)
    bsc_ref,    # (Cout, 1)           shortcut bias
    o_ref,      # (Cout, N)
    *, W,
):
    N = x_ref.shape[-1]
    cdt = w1_ref.dtype                   # MXU operand dtype (f32 or bf16)

    x = x_ref[...]                       # (Cin_p, N) f32

    offsets = [(dy, dx) for dy in (-1, 0, 1) for dx in (-1, 0, 1)]
    # Hoisted per-tap border masks; each is (1, N).
    tap_masks = [m_ref[t] for t in range(9)]

    def im2col(a):
        # a: (C, N) f32 -> (9*C, N). Taps stacked along sublanes in (dy, dx)
        # order. Lane rotation via pltpu.roll (XLU); out-of-image (and, in the
        # batch-folded layout, cross-seam) lanes are zeroed by the host masks.
        pieces = []
        for t, (dy, dx) in enumerate(offsets):
            off = dy * W + dx
            if off == 0:
                pieces.append(a)                     # center tap: no roll/mask
            else:
                rolled = pltpu.roll(a, shift=(-off) % N, axis=1)
                pieces.append(rolled * tap_masks[t])
        return jnp.concatenate(pieces, axis=0)       # vreg-aligned stack

    # ---- BN1 (pre-folded scale/shift) + ReLU (f32 VPU) ---------------------
    h = jnp.maximum(x * s1_ref[...] + t1_ref[...], 0.0)          # (Cin_p, N)

    # ---- conv1 (3x3, no bias; BN2 scale folded into weights) + BN2 shift
    # ---- + ReLU: one im2col matmul -----------------------------------------
    p1 = im2col(h).astype(cdt)                                   # (9*Cin_p, N)
    h1 = jnp.dot(w1_ref[...], p1, preferred_element_type=jnp.float32)
    h1 = jnp.maximum(h1 + t2_ref[...], 0.0)                      # (Cint_p, N)

    # ---- conv2 (3x3, no bias): second im2col matmul -------------------------
    p2 = im2col(h1).astype(cdt)                                  # (9*Cint_p, N)
    out = jnp.dot(w2_ref[...], p2, preferred_element_type=jnp.float32)

    # ---- 1x1 shortcut on the RAW input, kept in f32, + its bias ------------
    out = out + jnp.dot(wsc_ref[...], x, preferred_element_type=jnp.float32)
    o_ref[...] = (out + bsc_ref[...]).astype(o_ref.dtype)


def residual_block(x_nchw, params, *, use_bf16=True, fold_batch=None):
    """x_nchw: (B, Cin, H, W) float32. Returns (B, Cout, H, W) float32."""
    (g1, b1, m1, v1, w1, g2, b2, m2, v2, w2, wsc, bsc) = params
    B, Cin, H, W = x_nchw.shape
    HW = H * W
    Cint = w1.shape[3]
    Cout = w2.shape[3]
    f32 = jnp.float32
    mm_dtype = jnp.bfloat16 if use_bf16 else f32

    if fold_batch is None:
        fold_batch = _single_tensorcore_chip()

    # Pad channel dims to the f32 sublane packing so each im2col tap piece is
    # vreg-aligned and the K concats are plain vreg stacks.
    PACK = 8
    Cin_p = _round_up(Cin, PACK)
    Cint_p = _round_up(Cint, PACK)

    # --- host-side parameter folding ----------------------------------------
    scale1 = (g1 / jnp.sqrt(v1 + EPS)).astype(f32)
    shift1 = (b1 - m1 * scale1).astype(f32)
    scale2 = (g2 / jnp.sqrt(v2 + EPS)).astype(f32)
    shift2 = (b2 - m2 * scale2).astype(f32)

    s1 = jnp.zeros((Cin_p, 1), f32).at[:Cin, 0].set(scale1)
    t1 = jnp.zeros((Cin_p, 1), f32).at[:Cin, 0].set(shift1)
    t2 = jnp.zeros((Cint_p, 1), f32).at[:Cint, 0].set(shift2)

    # conv1 HWIO -> (Cint_p, 9*Cin_p) matmul weight; padded channel rows/cols
    # are zero; BN2's scale is folded into the output channels.
    w1p = jnp.zeros((3, 3, Cin_p, Cint), f32).at[:, :, :Cin, :].set(w1.astype(f32))
    w1p = w1p * scale2[None, None, None, :]
    w1mat = jnp.zeros((Cint_p, 9 * Cin_p), f32).at[:Cint, :].set(
        w1p.reshape(9 * Cin_p, Cint).T)

    # conv2 HWIO -> (Cout, 9*Cint_p).
    w2p = jnp.zeros((3, 3, Cint_p, Cout), f32).at[:, :, :Cint, :].set(w2.astype(f32))
    w2mat = w2p.reshape(9 * Cint_p, Cout).T

    # 1x1 shortcut (Cout, Cin_p), kept f32 in-kernel.
    wscmat = jnp.zeros((Cout, Cin_p), f32).at[:, :Cin].set(wsc.astype(f32).T)
    bscv = bsc.astype(f32).reshape(Cout, 1)

    # --- input: channels on sublanes, batch*pixels on lanes (b-major) -------
    x2d = jnp.zeros((Cin_p, B * HW), f32).at[:Cin, :].set(
        x_nchw.astype(f32).transpose(1, 0, 2, 3).reshape(Cin, B * HW))

    # --- hoisted 3x3 border masks (per tap, per-image coordinates) ----------
    hw = jnp.arange(HW, dtype=jnp.int32)
    yy, xx = hw // W, hw % W
    mrows = []
    for dy in (-1, 0, 1):
        for dx in (-1, 0, 1):
            mrows.append(((yy + dy >= 0) & (yy + dy < H)
                          & (xx + dx >= 0) & (xx + dx < W)).astype(f32))
    masks = jnp.stack(mrows, axis=0)                      # (9, HW)

    num_blocks = 1 if fold_batch else B
    N = (B * HW) // num_blocks
    if fold_batch and B > 1:
        # Per-image masks tiled across the batch seam: lane rolls that would
        # leak pixels between images land on masked (zeroed) lanes.
        masks = jnp.tile(masks, (1, B))
    masks = masks.reshape(9, 1, N)

    kernel = functools.partial(_residual_block_kernel, W=W)

    grid_spec = pltpu.PrefetchScalarGridSpec(
        num_scalar_prefetch=0,
        grid=(num_blocks,),
        in_specs=[
            pl.BlockSpec((Cin_p, N), lambda b: (0, b)),              # x
            pl.BlockSpec((9, 1, N), lambda b: (0, 0, 0)),            # masks
            pl.BlockSpec((Cin_p, 1), lambda b: (0, 0)),              # scale1
            pl.BlockSpec((Cin_p, 1), lambda b: (0, 0)),              # shift1
            pl.BlockSpec((Cint_p, 9 * Cin_p), lambda b: (0, 0)),     # w1mat
            pl.BlockSpec((Cint_p, 1), lambda b: (0, 0)),             # shift2
            pl.BlockSpec((Cout, 9 * Cint_p), lambda b: (0, 0)),      # w2mat
            pl.BlockSpec((Cout, Cin_p), lambda b: (0, 0)),           # wsc
            pl.BlockSpec((Cout, 1), lambda b: (0, 0)),               # bsc
        ],
        out_specs=pl.BlockSpec((Cout, N), lambda b: (0, b)),
    )

    fn = pl.pallas_call(
        kernel,
        out_shape=jax.ShapeDtypeStruct((Cout, B * HW), f32),
        grid_spec=grid_spec,
        compiler_params=pltpu.CompilerParams(
            dimension_semantics=("parallel",)),
    )
    out2d = fn(x2d, masks, s1, t1,
               w1mat.astype(mm_dtype), t2, w2mat.astype(mm_dtype),
               wscmat, bscv)
    return out2d.reshape(Cout, B, H, W).transpose(1, 0, 2, 3)


def reference(x_nchw, params):
    (g1, b1, m1, v1, w1, g2, b2, m2, v2, w2, wsc, bsc) = params
    dn = ("NCHW", "HWIO", "NCHW")

    def bn(t, g, b, m, v):
        s = g / jnp.sqrt(v + EPS)
        return t * s[None, :, None, None] + (b - m * s)[None, :, None, None]

    h = jnp.maximum(bn(x_nchw, g1, b1, m1, v1), 0.0)
    h = lax.conv_general_dilated(h, w1, (1, 1), "SAME", dimension_numbers=dn)
    h = jnp.maximum(bn(h, g2, b2, m2, v2), 0.0)
    h = lax.conv_general_dilated(h, w2, (1, 1), "SAME", dimension_numbers=dn)
    sc = jnp.einsum("bchw,co->bohw", x_nchw, wsc) + bsc[None, :, None, None]
    return h + sc


if __name__ == "__main__":
    # Small shapes consistent with the module: NCHW input (2, 4, 16, 16),
    # dim_in=4, dim_out=8 (=> shortcut 1x1 conv active), dim_inter=8.
    B, Cin, H, W = 2, 4, 16, 16
    Cout = 8
    Cint = Cout

    key = jax.random.PRNGKey(0)
    keys = jax.random.split(key, 12)

    x = jax.random.normal(keys[0], (B, Cin, H, W), jnp.float32)

    # Deterministic synthetic parameters (shapes as in the PyTorch module;
    # conv weights kept in HWIO, shortcut 1x1 weight as (Cin, Cout)).
    g1 = 1.0 + 0.1 * jax.random.normal(keys[1], (Cin,), jnp.float32)
    b1 = 0.1 * jax.random.normal(keys[2], (Cin,), jnp.float32)
    m1 = 0.1 * jax.random.normal(keys[3], (Cin,), jnp.float32)
    v1 = jax.random.uniform(keys[4], (Cin,), jnp.float32, 0.5, 1.5)
    w1 = 0.1 * jax.random.normal(keys[5], (3, 3, Cin, Cint), jnp.float32)
    g2 = 1.0 + 0.1 * jax.random.normal(keys[6], (Cint,), jnp.float32)
    b2 = 0.1 * jax.random.normal(keys[7], (Cint,), jnp.float32)
    m2 = 0.1 * jax.random.normal(keys[8], (Cint,), jnp.float32)
    v2 = jax.random.uniform(keys[9], (Cint,), jnp.float32, 0.5, 1.5)
    w2 = 0.1 * jax.random.normal(keys[10], (3, 3, Cint, Cout), jnp.float32)
    wsc = 0.1 * jax.random.normal(keys[11], (Cin, Cout), jnp.float32)
    bsc = 0.05 * jnp.arange(Cout, dtype=jnp.float32)

    params = (g1, b1, m1, v1, w1, g2, b2, m2, v2, w2, wsc, bsc)

    ref = reference(x, params)

    # f32 matmul path on the chip-auto grid layout: tight numerical check.
    out32 = jax.block_until_ready(residual_block(x, params, use_bf16=False))
    assert out32.shape == (B, Cout, H, W), out32.shape
    err32 = float(jnp.max(jnp.abs(out32 - ref)))
    assert err32 < 1e-3, err32

    # bf16 MXU-operand path (f32 accumulation, f32 shortcut): looser tolerance.
    out16 = jax.block_until_ready(residual_block(x, params, use_bf16=True))
    err16 = float(jnp.max(jnp.abs(out16 - ref)))
    assert err16 < 5e-2, err16

    # Also exercise the alternate grid layout (batch-fold vs per-image grid)
    # so both code paths are validated regardless of the chip generation.
    default_fold = _single_tensorcore_chip()
    out_alt = jax.block_until_ready(
        residual_block(x, params, use_bf16=False, fold_batch=not default_fold))
    err_alt = float(jnp.max(jnp.abs(out_alt - ref)))
    assert err_alt < 1e-3, err_alt

    print("KERNEL_OK")
</pallas_src>

<mosaic_0001>
module attributes {stable_mosaic.version = 11 : i64} {
  func.func @_residual_block_kernel(%arg0: i32, %arg1: memref<8x512xf32, #tpu.memory_space<vmem>>, %arg2: memref<9x1x512xf32, #tpu.memory_space<vmem>>, %arg3: memref<8x1xf32, #tpu.memory_space<vmem>>, %arg4: memref<8x1xf32, #tpu.memory_space<vmem>>, %arg5: memref<8x72xf32, #tpu.memory_space<vmem>>, %arg6: memref<8x1xf32, #tpu.memory_space<vmem>>, %arg7: memref<8x72xf32, #tpu.memory_space<vmem>>, %arg8: memref<8x8xf32, #tpu.memory_space<vmem>>, %arg9: memref<8x1xf32, #tpu.memory_space<vmem>>, %arg10: memref<8x512xf32, #tpu.memory_space<vmem>>) attributes {dimension_semantics = [#tpu.dimension_semantics<parallel>], iteration_bounds = array<i64: 1>, scalar_prefetch = 0 : i64, scratch_operands = 0 : i64, tpu.core_type = #tpu.core_type<tc>, window_params = [{transform_indices = @transform_0, window_bounds = array<i64: 8, 512>}, {pipeline_mode = #tpu.pipeline_mode<synchronous>, transform_indices = @transform_1, window_bounds = array<i64: 9, 1, 512>}, {pipeline_mode = #tpu.pipeline_mode<synchronous>, transform_indices = @transform_2, window_bounds = array<i64: 8, 1>}, {pipeline_mode = #tpu.pipeline_mode<synchronous>, transform_indices = @transform_3, window_bounds = array<i64: 8, 1>}, {pipeline_mode = #tpu.pipeline_mode<synchronous>, transform_indices = @transform_4, window_bounds = array<i64: 8, 72>}, {pipeline_mode = #tpu.pipeline_mode<synchronous>, transform_indices = @transform_5, window_bounds = array<i64: 8, 1>}, {pipeline_mode = #tpu.pipeline_mode<synchronous>, transform_indices = @transform_6, window_bounds = array<i64: 8, 72>}, {pipeline_mode = #tpu.pipeline_mode<synchronous>, transform_indices = @transform_7, window_bounds = array<i64: 8, 8>}, {pipeline_mode = #tpu.pipeline_mode<synchronous>, transform_indices = @transform_8, window_bounds = array<i64: 8, 1>}, {transform_indices = @transform_9, window_bounds = array<i64: 8, 512>}]} {
    %c0 = arith.constant 0 : index
    %c0_0 = arith.constant 0 : index
    %0 = vector.load %arg1[%c0, %c0_0] : memref<8x512xf32, #tpu.memory_space<vmem>>, vector<8x512xf32>
    %c0_1 = arith.constant 0 : index
    %c0_2 = arith.constant 0 : index
    %c0_3 = arith.constant 0 : index
    %1 = vector.load %arg2[%c0_1, %c0_2, %c0_3] : memref<9x1x512xf32, #tpu.memory_space<vmem>>, vector<1x1x512xf32>
    %2 = vector.shape_cast %1 : vector<1x1x512xf32> to vector<1x512xf32>
    %c1 = arith.constant 1 : index
    %c0_4 = arith.constant 0 : index
    %c0_5 = arith.constant 0 : index
    %3 = vector.load %arg2[%c1, %c0_4, %c0_5] : memref<9x1x512xf32, #tpu.memory_space<vmem>>, vector<1x1x512xf32>
    %4 = vector.shape_cast %3 : vector<1x1x512xf32> to vector<1x512xf32>
    %c2 = arith.constant 2 : index
    %c0_6 = arith.constant 0 : index
    %c0_7 = arith.constant 0 : index
    %5 = vector.load %arg2[%c2, %c0_6, %c0_7] : memref<9x1x512xf32, #tpu.memory_space<vmem>>, vector<1x1x512xf32>
    %6 = vector.shape_cast %5 : vector<1x1x512xf32> to vector<1x512xf32>
    %c3 = arith.constant 3 : index
    %c0_8 = arith.constant 0 : index
    %c0_9 = arith.constant 0 : index
    %7 = vector.load %arg2[%c3, %c0_8, %c0_9] : memref<9x1x512xf32, #tpu.memory_space<vmem>>, vector<1x1x512xf32>
    %8 = vector.shape_cast %7 : vector<1x1x512xf32> to vector<1x512xf32>
    %c5 = arith.constant 5 : index
    %c0_10 = arith.constant 0 : index
    %c0_11 = arith.constant 0 : index
    %9 = vector.load %arg2[%c5, %c0_10, %c0_11] : memref<9x1x512xf32, #tpu.memory_space<vmem>>, vector<1x1x512xf32>
    %10 = vector.shape_cast %9 : vector<1x1x512xf32> to vector<1x512xf32>
    %c6 = arith.constant 6 : index
    %c0_12 = arith.constant 0 : index
    %c0_13 = arith.constant 0 : index
    %11 = vector.load %arg2[%c6, %c0_12, %c0_13] : memref<9x1x512xf32, #tpu.memory_space<vmem>>, vector<1x1x512xf32>
    %12 = vector.shape_cast %11 : vector<1x1x512xf32> to vector<1x512xf32>
    %c7 = arith.constant 7 : index
    %c0_14 = arith.constant 0 : index
    %c0_15 = arith.constant 0 : index
    %13 = vector.load %arg2[%c7, %c0_14, %c0_15] : memref<9x1x512xf32, #tpu.memory_space<vmem>>, vector<1x1x512xf32>
    %14 = vector.shape_cast %13 : vector<1x1x512xf32> to vector<1x512xf32>
    %c8 = arith.constant 8 : index
    %c0_16 = arith.constant 0 : index
    %c0_17 = arith.constant 0 : index
    %15 = vector.load %arg2[%c8, %c0_16, %c0_17] : memref<9x1x512xf32, #tpu.memory_space<vmem>>, vector<1x1x512xf32>
    %16 = vector.shape_cast %15 : vector<1x1x512xf32> to vector<1x512xf32>
    %c0_18 = arith.constant 0 : index
    %c0_19 = arith.constant 0 : index
    %17 = vector.load %arg3[%c0_18, %c0_19] : memref<8x1xf32, #tpu.memory_space<vmem>>, vector<8x1xf32>
    %18 = vector.broadcast %17 : vector<8x1xf32> to vector<8x512xf32>
    %19 = arith.mulf %0, %18 : vector<8x512xf32>
    %c0_20 = arith.constant 0 : index
    %c0_21 = arith.constant 0 : index
    %20 = vector.load %arg4[%c0_20, %c0_21] : memref<8x1xf32, #tpu.memory_space<vmem>>, vector<8x1xf32>
    %21 = vector.broadcast %20 : vector<8x1xf32> to vector<8x512xf32>
    %22 = arith.addf %19, %21 : vector<8x512xf32>
    %cst = arith.constant 0.000000e+00 : f32
    %23 = vector.broadcast %cst : f32 to vector<8x512xf32>
    %24 = arith.maximumf %22, %23 : vector<8x512xf32>
    %c17_i32 = arith.constant 17 : i32
    %25 = tpu.dynamic_rotate %24 by %c17_i32 dim 1 : vector<8x512xf32>, i32 -> vector<8x512xf32>
    %26 = vector.broadcast %2 : vector<1x512xf32> to vector<8x512xf32>
    %27 = arith.mulf %25, %26 : vector<8x512xf32>
    %c16_i32 = arith.constant 16 : i32
    %28 = tpu.dynamic_rotate %24 by %c16_i32 dim 1 : vector<8x512xf32>, i32 -> vector<8x512xf32>
    %29 = vector.broadcast %4 : vector<1x512xf32> to vector<8x512xf32>
    %30 = arith.mulf %28, %29 : vector<8x512xf32>
    %c15_i32 = arith.constant 15 : i32
    %31 = tpu.dynamic_rotate %24 by %c15_i32 dim 1 : vector<8x512xf32>, i32 -> vector<8x512xf32>
    %32 = vector.broadcast %6 : vector<1x512xf32> to vector<8x512xf32>
    %33 = arith.mulf %31, %32 : vector<8x512xf32>
    %c1_i32 = arith.constant 1 : i32
    %34 = tpu.dynamic_rotate %24 by %c1_i32 dim 1 : vector<8x512xf32>, i32 -> vector<8x512xf32>
    %35 = vector.broadcast %8 : vector<1x512xf32> to vector<8x512xf32>
    %36 = arith.mulf %34, %35 : vector<8x512xf32>
    %c511_i32 = arith.constant 511 : i32
    %37 = tpu.dynamic_rotate %24 by %c511_i32 dim 1 : vector<8x512xf32>, i32 -> vector<8x512xf32>
    %38 = vector.broadcast %10 : vector<1x512xf32> to vector<8x512xf32>
    %39 = arith.mulf %37, %38 : vector<8x512xf32>
    %c497_i32 = arith.constant 497 : i32
    %40 = tpu.dynamic_rotate %24 by %c497_i32 dim 1 : vector<8x512xf32>, i32 -> vector<8x512xf32>
    %41 = vector.broadcast %12 : vector<1x512xf32> to vector<8x512xf32>
    %42 = arith.mulf %40, %41 : vector<8x512xf32>
    %c496_i32 = arith.constant 496 : i32
    %43 = tpu.dynamic_rotate %24 by %c496_i32 dim 1 : vector<8x512xf32>, i32 -> vector<8x512xf32>
    %44 = vector.broadcast %14 : vector<1x512xf32> to vector<8x512xf32>
    %45 = arith.mulf %43, %44 : vector<8x512xf32>
    %c495_i32 = arith.constant 495 : i32
    %46 = tpu.dynamic_rotate %24 by %c495_i32 dim 1 : vector<8x512xf32>, i32 -> vector<8x512xf32>
    %47 = vector.broadcast %16 : vector<1x512xf32> to vector<8x512xf32>
    %48 = arith.mulf %46, %47 : vector<8x512xf32>
    %49 = tpu.concatenate %27, %30, %33, %36, %24, %39, %42, %45, %48 in 0 : vector<8x512xf32>, vector<8x512xf32>, vector<8x512xf32>, vector<8x512xf32>, vector<8x512xf32>, vector<8x512xf32>, vector<8x512xf32>, vector<8x512xf32>, vector<8x512xf32> -> vector<72x512xf32>
    %c0_22 = arith.constant 0 : index
    %c0_23 = arith.constant 0 : index
    %50 = vector.load %arg5[%c0_22, %c0_23] : memref<8x72xf32, #tpu.memory_space<vmem>>, vector<8x72xf32>
    %cst_24 = arith.constant dense<0.000000e+00> : vector<8x512xf32>
    %51 = tpu.matmul %50, %49, %cst_24 {dimension_numbers = #tpu.dot_dimension_numbers<[1], [0], [0], [1], [0, 0, 1, 1], [], []>} : vector<8x72xf32>, vector<72x512xf32>, vector<8x512xf32> -> vector<8x512xf32>
    %c0_25 = arith.constant 0 : index
    %c0_26 = arith.constant 0 : index
    %52 = vector.load %arg6[%c0_25, %c0_26] : memref<8x1xf32, #tpu.memory_space<vmem>>, vector<8x1xf32>
    %53 = vector.broadcast %52 : vector<8x1xf32> to vector<8x512xf32>
    %54 = arith.addf %51, %53 : vector<8x512xf32>
    %cst_27 = arith.constant 0.000000e+00 : f32
    %55 = vector.broadcast %cst_27 : f32 to vector<8x512xf32>
    %56 = arith.maximumf %54, %55 : vector<8x512xf32>
    %c17_i32_28 = arith.constant 17 : i32
    %57 = tpu.dynamic_rotate %56 by %c17_i32_28 dim 1 : vector<8x512xf32>, i32 -> vector<8x512xf32>
    %58 = vector.broadcast %2 : vector<1x512xf32> to vector<8x512xf32>
    %59 = arith.mulf %57, %58 : vector<8x512xf32>
    %c16_i32_29 = arith.constant 16 : i32
    %60 = tpu.dynamic_rotate %56 by %c16_i32_29 dim 1 : vector<8x512xf32>, i32 -> vector<8x512xf32>
    %61 = vector.broadcast %4 : vector<1x512xf32> to vector<8x512xf32>
    %62 = arith.mulf %60, %61 : vector<8x512xf32>
    %c15_i32_30 = arith.constant 15 : i32
    %63 = tpu.dynamic_rotate %56 by %c15_i32_30 dim 1 : vector<8x512xf32>, i32 -> vector<8x512xf32>
    %64 = vector.broadcast %6 : vector<1x512xf32> to vector<8x512xf32>
    %65 = arith.mulf %63, %64 : vector<8x512xf32>
    %c1_i32_31 = arith.constant 1 : i32
    %66 = tpu.dynamic_rotate %56 by %c1_i32_31 dim 1 : vector<8x512xf32>, i32 -> vector<8x512xf32>
    %67 = vector.broadcast %8 : vector<1x512xf32> to vector<8x512xf32>
    %68 = arith.mulf %66, %67 : vector<8x512xf32>
    %c511_i32_32 = arith.constant 511 : i32
    %69 = tpu.dynamic_rotate %56 by %c511_i32_32 dim 1 : vector<8x512xf32>, i32 -> vector<8x512xf32>
    %70 = vector.broadcast %10 : vector<1x512xf32> to vector<8x512xf32>
    %71 = arith.mulf %69, %70 : vector<8x512xf32>
    %c497_i32_33 = arith.constant 497 : i32
    %72 = tpu.dynamic_rotate %56 by %c497_i32_33 dim 1 : vector<8x512xf32>, i32 -> vector<8x512xf32>
    %73 = vector.broadcast %12 : vector<1x512xf32> to vector<8x512xf32>
    %74 = arith.mulf %72, %73 : vector<8x512xf32>
    %c496_i32_34 = arith.constant 496 : i32
    %75 = tpu.dynamic_rotate %56 by %c496_i32_34 dim 1 : vector<8x512xf32>, i32 -> vector<8x512xf32>
    %76 = vector.broadcast %14 : vector<1x512xf32> to vector<8x512xf32>
    %77 = arith.mulf %75, %76 : vector<8x512xf32>
    %c495_i32_35 = arith.constant 495 : i32
    %78 = tpu.dynamic_rotate %56 by %c495_i32_35 dim 1 : vector<8x512xf32>, i32 -> vector<8x512xf32>
    %79 = vector.broadcast %16 : vector<1x512xf32> to vector<8x512xf32>
    %80 = arith.mulf %78, %79 : vector<8x512xf32>
    %81 = tpu.concatenate %59, %62, %65, %68, %56, %71, %74, %77, %80 in 0 : vector<8x512xf32>, vector<8x512xf32>, vector<8x512xf32>, vector<8x512xf32>, vector<8x512xf32>, vector<8x512xf32>, vector<8x512xf32>, vector<8x512xf32>, vector<8x512xf32> -> vector<72x512xf32>
    %c0_36 = arith.constant 0 : index
    %c0_37 = arith.constant 0 : index
    %82 = vector.load %arg7[%c0_36, %c0_37] : memref<8x72xf32, #tpu.memory_space<vmem>>, vector<8x72xf32>
    %cst_38 = arith.constant dense<0.000000e+00> : vector<8x512xf32>
    %83 = tpu.matmul %82, %81, %cst_38 {dimension_numbers = #tpu.dot_dimension_numbers<[1], [0], [0], [1], [0, 0, 1, 1], [], []>} : vector<8x72xf32>, vector<72x512xf32>, vector<8x512xf32> -> vector<8x512xf32>
    %c0_39 = arith.constant 0 : index
    %c0_40 = arith.constant 0 : index
    %84 = vector.load %arg8[%c0_39, %c0_40] : memref<8x8xf32, #tpu.memory_space<vmem>>, vector<8x8xf32>
    %cst_41 = arith.constant dense<0.000000e+00> : vector<8x512xf32>
    %85 = tpu.matmul %84, %0, %cst_41 {dimension_numbers = #tpu.dot_dimension_numbers<[1], [0], [0], [1], [0, 0, 1, 1], [], []>} : vector<8x8xf32>, vector<8x512xf32>, vector<8x512xf32> -> vector<8x512xf32>
    %86 = arith.addf %83, %85 : vector<8x512xf32>
    %c0_42 = arith.constant 0 : index
    %c0_43 = arith.constant 0 : index
    %87 = vector.load %arg9[%c0_42, %c0_43] : memref<8x1xf32, #tpu.memory_space<vmem>>, vector<8x1xf32>
    %88 = vector.broadcast %87 : vector<8x1xf32> to vector<8x512xf32>
    %89 = arith.addf %86, %88 : vector<8x512xf32>
    %c0_44 = arith.constant 0 : index
    %c0_45 = arith.constant 0 : index
    %90 = vector.load %arg10[%c0_44, %c0_45] : memref<8x512xf32, #tpu.memory_space<vmem>>, vector<8x512xf32>
    tpu.vector_store %arg10[%c0_44, %c0_45], %89 {strides = array<i32>} : memref<8x512xf32, #tpu.memory_space<vmem>>, vector<8x512xf32>,
    return
  }
  func.func @transform_0(%arg0: i32) -> (i32, i32) {
    %c0_i32 = arith.constant 0 : i32
    %c0_i32_0 = arith.constant 0 : i32
    return %c0_i32, %arg0 : i32, i32
  }
  func.func @transform_1(%arg0: i32) -> (i32, i32, i32) {
    %c0_i32 = arith.constant 0 : i32
    %c0_i32_0 = arith.constant 0 : i32
    %c0_i32_1 = arith.constant 0 : i32
    %c0_i32_2 = arith.constant 0 : i32
    return %c0_i32, %c0_i32_0, %c0_i32_1 : i32, i32, i32
  }
  func.func @transform_2(%arg0: i32) -> (i32, i32) {
    %c0_i32 = arith.constant 0 : i32
    %c0_i32_0 = arith.constant 0 : i32
    %c0_i32_1 = arith.constant 0 : i32
    return %c0_i32, %c0_i32_0 : i32, i32
  }
  func.func @transform_3(%arg0: i32) -> (i32, i32) {
    %c0_i32 = arith.constant 0 : i32
    %c0_i32_0 = arith.constant 0 : i32
    %c0_i32_1 = arith.constant 0 : i32
    return %c0_i32, %c0_i32_0 : i32, i32
  }
  func.func @transform_4(%arg0: i32) -> (i32, i32) {
    %c0_i32 = arith.constant 0 : i32
    %c0_i32_0 = arith.constant 0 : i32
    %c0_i32_1 = arith.constant 0 : i32
    return %c0_i32, %c0_i32_0 : i32, i32
  }
  func.func @transform_5(%arg0: i32) -> (i32, i32) {
    %c0_i32 = arith.constant 0 : i32
    %c0_i32_0 = arith.constant 0 : i32
    %c0_i32_1 = arith.constant 0 : i32
    return %c0_i32, %c0_i32_0 : i32, i32
  }
  func.func @transform_6(%arg0: i32) -> (i32, i32) {
    %c0_i32 = arith.constant 0 : i32
    %c0_i32_0 = arith.constant 0 : i32
    %c0_i32_1 = arith.constant 0 : i32
    return %c0_i32, %c0_i32_0 : i32, i32
  }
  func.func @transform_7(%arg0: i32) -> (i32, i32) {
    %c0_i32 = arith.constant 0 : i32
    %c0_i32_0 = arith.constant 0 : i32
    %c0_i32_1 = arith.constant 0 : i32
    return %c0_i32, %c0_i32_0 : i32, i32
  }
  func.func @transform_8(%arg0: i32) -> (i32, i32) {
    %c0_i32 = arith.constant 0 : i32
    %c0_i32_0 = arith.constant 0 : i32
    %c0_i32_1 = arith.constant 0 : i32
    return %c0_i32, %c0_i32_0 : i32, i32
  }
  func.func @transform_9(%arg0: i32) -> (i32, i32) {
    %c0_i32 = arith.constant 0 : i32
    %c0_i32_0 = arith.constant 0 : i32
    return %c0_i32, %arg0 : i32, i32
  }
}

</mosaic_0001>

<llo_original>
// kernel: tpu_custom_call.1
$region0: #{tpu_custom_call.1}
  #allocation0 [shape = 'u32[]', space=smem, size = 0x4, offset = 0x4, fixed_abs, tag = 'smem constant byte address 0x4 - core index']
  #allocation1 [shape = 'u32[144,128]{1,0:T(1,128)}', space=vmem, size = 0x12000, scoped, tag = 'internal scratch']
  %s0 = inlined_call_operand.hbm [shape: f32[8,512], index: 0, kind: input, shape index: {}]
  %s1 = inlined_call_operand.vmem [shape: f32[9,1,512], index: 1, kind: input, shape index: {}]
  %s2 = inlined_call_operand.vmem [shape: f32[8,1], index: 2, kind: input, shape index: {}]
  %s3 = inlined_call_operand.vmem [shape: f32[8,1], index: 3, kind: input, shape index: {}]
  %s4 = inlined_call_operand.hbm [shape: f32[8,72], index: 4, kind: input, shape index: {}]
  %s5 = inlined_call_operand.vmem [shape: f32[8,1], index: 5, kind: input, shape index: {}]
  %s6 = inlined_call_operand.vmem [shape: f32[8,72], index: 6, kind: input, shape index: {}]
  %s7 = inlined_call_operand.hbm [shape: f32[8,8], index: 7, kind: input, shape index: {}]
  %s8 = inlined_call_operand.vmem [shape: f32[8,1], index: 8, kind: input, shape index: {}]
  %s9 = inlined_call_operand.hbm [shape: f32[8,512], index: 9, kind: output, shape index: {}]
  %s10 = sld [smem:[#allocation0]]
  $region58: #{tpu_custom_call.1} parent=0
    _
  %s12 = ssub.s32 1, %s10
  %s13 = scalar_select 0, %s12, %s10
  $region1: #{tpu_custom_call.1} parent=0
    #allocation2 [shape = 'u8[16384]{0}', space=vmem, size = 0x4000, scoped, tag = 'input window, operand 0, single buffered']
    #allocation3 [shape = 's32[1]{0}', space=sflag, size = 0x4, scoped, tag = 'scoped memory for tpu_custom_call.1']
    #allocation4 [shape = 's32[1]{0}', space=sflag, size = 0x4, scoped, tag = 'scoped memory for tpu_custom_call.1']
    #allocation5 [shape = 'u8[4096]{0}', space=vmem, size = 0x1000, scoped, tag = 'input window, operand 4, single buffered']
    #allocation6 [shape = 's32[1]{0}', space=sflag, size = 0x4, scoped, tag = 'scoped memory for tpu_custom_call.1']
    #allocation7 [shape = 'u8[4096]{0}', space=vmem, size = 0x1000, scoped, tag = 'input window, operand 7, single buffered']
    #allocation8 [shape = 'u8[16384]{0}', space=vmem, size = 0x4000, scoped, tag = 'output window, operand 0, single buffered']
    %14 = vsyncpa [#allocation3], 0
    %15 = vsyncpa [#allocation6], 0
    %16 = vsyncpa [#allocation4], 0
    // Predicated region
    $region2: #{tpu_custom_call.1} parent=1 // pred_check
      _
    $region3: #{tpu_custom_call.1} parent=1 // pred_check_branch
      %18 = sbr.rel (0) target = $region5
    $region4: #{tpu_custom_call.1} parent=1 // pred_region
      %s20 = ssub.s32 512, 512
      %21 = vsyncadd [#allocation3], %s20
      %s23 = sshll.u32 [#allocation2], 4
      %s24 = int_to_ptr.vmem [resolvable:$true] %s23
      %26 = dma.hbm_to_vmem [thread:$0]  %s0, 512, %s24, [#allocation3]
    $region5: #{tpu_custom_call.1} parent=1 // pred_fallthru
      _
    // Predicated region
    $region6: #{tpu_custom_call.1} parent=1 // pred_check
      _
    $region7: #{tpu_custom_call.1} parent=1 // pred_check_branch
      %28 = sbr.rel (0) target = $region9
    $region8: #{tpu_custom_call.1} parent=1 // pred_region
      _
    $region9: #{tpu_custom_call.1} parent=1 // pred_fallthru
      _
    // Predicated region
    $region10: #{tpu_custom_call.1} parent=1 // pred_check
      _
    $region11: #{tpu_custom_call.1} parent=1 // pred_check_branch
      %30 = sbr.rel (0) target = $region13
    $region12: #{tpu_custom_call.1} parent=1 // pred_region
      _
    $region13: #{tpu_custom_call.1} parent=1 // pred_fallthru
      _
    // Predicated region
    $region14: #{tpu_custom_call.1} parent=1 // pred_check
      _
    $region15: #{tpu_custom_call.1} parent=1 // pred_check_branch
      %32 = sbr.rel (0) target = $region17
    $region16: #{tpu_custom_call.1} parent=1 // pred_region
      _
    $region17: #{tpu_custom_call.1} parent=1 // pred_fallthru
      _
    // Predicated region
    $region18: #{tpu_custom_call.1} parent=1 // pred_check
      _
    $region19: #{tpu_custom_call.1} parent=1 // pred_check_branch
      %34 = sbr.rel (0) target = $region21
    $region20: #{tpu_custom_call.1} parent=1 // pred_region
      %s36 = ssub.s32 128, 128
      %37 = vsyncadd [#allocation6], %s36
      %s39 = sshll.u32 [#allocation5], 4
      %s40 = int_to_ptr.vmem [resolvable:$true] %s39
      %42 = dma.hbm_to_vmem [thread:$0]  %s4, 128, %s40, [#allocation6]
    $region21: #{tpu_custom_call.1} parent=1 // pred_fallthru
      _
    // Predicated region
    $region22: #{tpu_custom_call.1} parent=1 // pred_check
      _
    $region23: #{tpu_custom_call.1} parent=1 // pred_check_branch
      %44 = sbr.rel (0) target = $region25
    $region24: #{tpu_custom_call.1} parent=1 // pred_region
      _
    $region25: #{tpu_custom_call.1} parent=1 // pred_fallthru
      _
    // Predicated region
    $region26: #{tpu_custom_call.1} parent=1 // pred_check
      _
    $region27: #{tpu_custom_call.1} parent=1 // pred_check_branch
      %46 = sbr.rel (0) target = $region29
    $region28: #{tpu_custom_call.1} parent=1 // pred_region
      _
    $region29: #{tpu_custom_call.1} parent=1 // pred_fallthru
      _
    // Predicated region
    $region30: #{tpu_custom_call.1} parent=1 // pred_check
      _
    $region31: #{tpu_custom_call.1} parent=1 // pred_check_branch
      %48 = sbr.rel (0) target = $region33
    $region32: #{tpu_custom_call.1} parent=1 // pred_region
      %s50 = ssub.s32 128, 128
      %51 = vsyncadd [#allocation6], %s50
      %s53 = sshll.u32 [#allocation7], 4
      %s54 = int_to_ptr.vmem [resolvable:$true] %s53
      %56 = dma.hbm_to_vmem [thread:$0]  %s7, 128, %s54, [#allocation6]
    $region33: #{tpu_custom_call.1} parent=1 // pred_fallthru
      _
    // Predicated region
    $region34: #{tpu_custom_call.1} parent=1 // pred_check
      _
    $region35: #{tpu_custom_call.1} parent=1 // pred_check_branch
      %58 = sbr.rel (0) target = $region37
    $region36: #{tpu_custom_call.1} parent=1 // pred_region
      _
    $region37: #{tpu_custom_call.1} parent=1 // pred_fallthru
      _
    // Predicated region
    $region38: #{tpu_custom_call.1} parent=1 // pred_check
      _
    $region39: #{tpu_custom_call.1} parent=1 // pred_check_branch
      %60 = sbr.rel (0) target = $region41
    $region40: #{tpu_custom_call.1} parent=1 // pred_region
      %61 = dma.done [#allocation3], 512
    $region41: #{tpu_custom_call.1} parent=1 // pred_fallthru
      _
    // Predicated region
    $region42: #{tpu_custom_call.1} parent=1 // pred_check
      _
    $region43: #{tpu_custom_call.1} parent=1 // pred_check_branch
      %63 = sbr.rel (0) target = $region45
    $region44: #{tpu_custom_call.1} parent=1 // pred_region
      %64 = dma.done [#allocation6], 128
    $region45: #{tpu_custom_call.1} parent=1 // pred_fallthru
      _
    // Predicated region
    $region46: #{tpu_custom_call.1} parent=1 // pred_check
      _
    $region47: #{tpu_custom_call.1} parent=1 // pred_check_branch
      %66 = sbr.rel (0) target = $region49
    $region48: #{tpu_custom_call.1} parent=1 // pred_region
      %67 = dma.done [#allocation6], 128
    $region49: #{tpu_custom_call.1} parent=1 // pred_fallthru
      _
    %v68 = vld [vmem:[#allocation2] sm:$0xff]
    %v69 = vld [vmem:[#allocation2 + $0x8] sm:$0xff]
    %v70 = vld [vmem:[#allocation2 + $0x10] sm:$0xff]
    %v71 = vld [vmem:[#allocation2 + $0x18] sm:$0xff]
    %v72 = vld [vmem:[%s1] sm:$0xf]
    %s73 = scalar_lea.vmem %s1, 4
    %v74 = vld [vmem:[%s73] sm:$0xf]
    %s75 = scalar_lea.vmem %s1, 8
    %v76 = vld [vmem:[%s75] sm:$0xf]
    %s77 = scalar_lea.vmem %s1, 12
    %v78 = vld [vmem:[%s77] sm:$0xf]
    %s79 = scalar_lea.vmem %s1, 20
    %v80 = vld [vmem:[%s79] sm:$0xf]
    %s81 = scalar_lea.vmem %s1, 24
    %v82 = vld [vmem:[%s81] sm:$0xf]
    %s83 = scalar_lea.vmem %s1, 28
    %v84 = vld [vmem:[%s83] sm:$0xf]
    %s85 = scalar_lea.vmem %s1, 32
    %v86 = vld [vmem:[%s85] sm:$0xf]
    %v87 = vld [vmem:[%s2] sm:$0xff]
    %89 = vset.pattern.permute.xlu0 0
    %90 = vperm.xlu0 %89, %v87
    %v91 = vpop.permute.xlu0 %90
    %v93 = vmul.f32 %v68, %v91
    %v94 = vmul.f32 %v69, %v91
    %v95 = vmul.f32 %v70, %v91
    %v96 = vmul.f32 %v71, %v91
    %v97 = vld [vmem:[%s3] sm:$0xff]
    %99 = vset.pattern.permute.xlu0 0
    %100 = vperm.xlu0 %99, %v97
    %v101 = vpop.permute.xlu0 %100
    %v103 = vadd.f32 %v93, %v101
    %v104 = vadd.f32 %v94, %v101
    %v105 = vadd.f32 %v95, %v101
    %v106 = vadd.f32 %v96, %v101
    %v107 = vmax.f32 %v103, 0.0
    %v108 = vmax.f32 %v104, 0.0
    %v109 = vmax.f32 %v105, 0.0
    %v110 = vmax.f32 %v106, 0.0
    %111 = vrot.lane.b32.xlu0 %v107, 17
    %v112 = vpop.permute.xlu0 %111
    %113 = vrot.lane.b32.xlu0 %v108, 17
    %v114 = vpop.permute.xlu0 %113
    %115 = vrot.lane.b32.xlu0 %v109, 17
    %v116 = vpop.permute.xlu0 %115
    %117 = vrot.lane.b32.xlu0 %v110, 17
    %v118 = vpop.permute.xlu0 %117
    %v119 = vlaneseq
    %v120 = vand.u32 %v119, 127
    %vm121 = vcmp.lt.s32.totalorder %v120, 17
    %v122 = vsel %vm121, %v116, %v118
    %v123 = vsel %vm121, %v114, %v116
    %v124 = vsel %vm121, %v112, %v114
    %v125 = vsel %vm121, %v118, %v112
    %v127 = vlaneseq
    %v128 = vshrl.u32 %v127, 7
    %v129 = vsub.s32 0, %v128
    %v130 = vrot.slane %v72, %v129
    %v131 = vlaneseq
    %v132 = vshrl.u32 %v131, 7
    %v133 = vsub.s32 1, %v132
    %v134 = vrot.slane %v72, %v133
    %v135 = vlaneseq
    %v136 = vshrl.u32 %v135, 7
    %v137 = vsub.s32 2, %v136
    %v138 = vrot.slane %v72, %v137
    %v139 = vlaneseq
    %v140 = vshrl.u32 %v139, 7
    %v141 = vsub.s32 3, %v140
    %v142 = vrot.slane %v72, %v141
    %v147 = vmul.f32 %v125, %v130
    %v148 = vmul.f32 %v124, %v134
    %v149 = vmul.f32 %v123, %v138
    %v150 = vmul.f32 %v122, %v142
    %151 = vrot.lane.b32.xlu0 %v107, 16
    %v152 = vpop.permute.xlu0 %151
    %153 = vrot.lane.b32.xlu0 %v108, 16
    %v154 = vpop.permute.xlu0 %153
    %155 = vrot.lane.b32.xlu0 %v109, 16
    %v156 = vpop.permute.xlu0 %155
    %157 = vrot.lane.b32.xlu0 %v110, 16
    %v158 = vpop.permute.xlu0 %157
    %vm159 = vcmp.lt.s32.totalorder %v120, 16
    %v160 = vsel %vm159, %v156, %v158
    %v161 = vsel %vm159, %v154, %v156
    %v162 = vsel %vm159, %v152, %v154
    %v163 = vsel %vm159, %v158, %v152
    %v165 = vlaneseq
    %v166 = vshrl.u32 %v165, 7
    %v167 = vsub.s32 0, %v166
    %v168 = vrot.slane %v74, %v167
    %v169 = vlaneseq
    %v170 = vshrl.u32 %v169, 7
    %v171 = vsub.s32 1, %v170
    %v172 = vrot.slane %v74, %v171
    %v173 = vlaneseq
    %v174 = vshrl.u32 %v173, 7
    %v175 = vsub.s32 2, %v174
    %v176 = vrot.slane %v74, %v175
    %v177 = vlaneseq
    %v178 = vshrl.u32 %v177, 7
    %v179 = vsub.s32 3, %v178
    %v180 = vrot.slane %v74, %v179
    %v185 = vmul.f32 %v163, %v168
    %v186 = vmul.f32 %v162, %v172
    %v187 = vmul.f32 %v161, %v176
    %v188 = vmul.f32 %v160, %v180
    %189 = vrot.lane.b32.xlu0 %v107, 15
    %v190 = vpop.permute.xlu0 %189
    %191 = vrot.lane.b32.xlu0 %v108, 15
    %v192 = vpop.permute.xlu0 %191
    %193 = vrot.lane.b32.xlu0 %v109, 15
    %v194 = vpop.permute.xlu0 %193
    %195 = vrot.lane.b32.xlu0 %v110, 15
    %v196 = vpop.permute.xlu0 %195
    %vm197 = vcmp.lt.s32.totalorder %v120, 15
    %v198 = vsel %vm197, %v194, %v196
    %v199 = vsel %vm197, %v192, %v194
    %v200 = vsel %vm197, %v190, %v192
    %v201 = vsel %vm197, %v196, %v190
    %v203 = vlaneseq
    %v204 = vshrl.u32 %v203, 7
    %v205 = vsub.s32 0, %v204
    %v206 = vrot.slane %v76, %v205
    %v207 = vlaneseq
    %v208 = vshrl.u32 %v207, 7
    %v209 = vsub.s32 1, %v208
    %v210 = vrot.slane %v76, %v209
    %v211 = vlaneseq
    %v212 = vshrl.u32 %v211, 7
    %v213 = vsub.s32 2, %v212
    %v214 = vrot.slane %v76, %v213
    %v215 = vlaneseq
    %v216 = vshrl.u32 %v215, 7
    %v217 = vsub.s32 3, %v216
    %v218 = vrot.slane %v76, %v217
    %v223 = vmul.f32 %v201, %v206
    %v224 = vmul.f32 %v200, %v210
    %v225 = vmul.f32 %v199, %v214
    %v226 = vmul.f32 %v198, %v218
    %227 = vrot.lane.b32.xlu0 %v107, 1
    %v228 = vpop.permute.xlu0 %227
    %229 = vrot.lane.b32.xlu0 %v108, 1
    %v230 = vpop.permute.xlu0 %229
    %231 = vrot.lane.b32.xlu0 %v109, 1
    %v232 = vpop.permute.xlu0 %231
    %233 = vrot.lane.b32.xlu0 %v110, 1
    %v234 = vpop.permute.xlu0 %233
    %vm235 = vcmp.lt.s32.totalorder %v120, 1
    %v236 = vsel %vm235, %v232, %v234
    %v237 = vsel %vm235, %v230, %v232
    %v238 = vsel %vm235, %v228, %v230
    %v239 = vsel %vm235, %v234, %v228
    %v241 = vlaneseq
    %v242 = vshrl.u32 %v241, 7
    %v243 = vsub.s32 0, %v242
    %v244 = vrot.slane %v78, %v243
    %v245 = vlaneseq
    %v246 = vshrl.u32 %v245, 7
    %v247 = vsub.s32 1, %v246
    %v248 = vrot.slane %v78, %v247
    %v249 = vlaneseq
    %v250 = vshrl.u32 %v249, 7
    %v251 = vsub.s32 2, %v250
    %v252 = vrot.slane %v78, %v251
    %v253 = vlaneseq
    %v254 = vshrl.u32 %v253, 7
    %v255 = vsub.s32 3, %v254
    %v256 = vrot.slane %v78, %v255
    %v261 = vmul.f32 %v239, %v244
    %v262 = vmul.f32 %v238, %v248
    %v263 = vmul.f32 %v237, %v252
    %v264 = vmul.f32 %v236, %v256
    %265 = vrot.lane.b32.xlu0 %v107, 127
    %v266 = vpop.permute.xlu0 %265
    %267 = vrot.lane.b32.xlu0 %v108, 127
    %v268 = vpop.permute.xlu0 %267
    %269 = vrot.lane.b32.xlu0 %v109, 127
    %v270 = vpop.permute.xlu0 %269
    %271 = vrot.lane.b32.xlu0 %v110, 127
    %v272 = vpop.permute.xlu0 %271
    %vm273 = vcmp.lt.s32.totalorder %v120, 127
    %v274 = vsel %vm273, %v270, %v272
    %v275 = vsel %vm273, %v268, %v270
    %v276 = vsel %vm273, %v266, %v268
    %v277 = vsel %vm273, %v272, %v266
    %v279 = vlaneseq
    %v280 = vshrl.u32 %v279, 7
    %v281 = vsub.s32 0, %v280
    %v282 = vrot.slane %v80, %v281
    %v283 = vlaneseq
    %v284 = vshrl.u32 %v283, 7
    %v285 = vsub.s32 1, %v284
    %v286 = vrot.slane %v80, %v285
    %v287 = vlaneseq
    %v288 = vshrl.u32 %v287, 7
    %v289 = vsub.s32 2, %v288
    %v290 = vrot.slane %v80, %v289
    %v291 = vlaneseq
    %v292 = vshrl.u32 %v291, 7
    %v293 = vsub.s32 3, %v292
    %v294 = vrot.slane %v80, %v293
    %v299 = vmul.f32 %v276, %v282
    %v300 = vmul.f32 %v275, %v286
    %v301 = vmul.f32 %v274, %v290
    %v302 = vmul.f32 %v277, %v294
    %303 = vrot.lane.b32.xlu0 %v107, 113
    %v304 = vpop.permute.xlu0 %303
    %305 = vrot.lane.b32.xlu0 %v108, 113
    %v306 = vpop.permute.xlu0 %305
    %307 = vrot.lane.b32.xlu0 %v109, 113
    %v308 = vpop.permute.xlu0 %307
    %309 = vrot.lane.b32.xlu0 %v110, 113
    %v310 = vpop.permute.xlu0 %309
    %vm311 = vcmp.lt.s32.totalorder %v120, 113
    %v312 = vsel %vm311, %v308, %v310
    %v313 = vsel %vm311, %v306, %v308
    %v314 = vsel %vm311, %v304, %v306
    %v315 = vsel %vm311, %v310, %v304
    %v317 = vlaneseq
    %v318 = vshrl.u32 %v317, 7
    %v319 = vsub.s32 0, %v318
    %v320 = vrot.slane %v82, %v319
    %v321 = vlaneseq
    %v322 = vshrl.u32 %v321, 7
    %v323 = vsub.s32 1, %v322
    %v324 = vrot.slane %v82, %v323
    %v325 = vlaneseq
    %v326 = vshrl.u32 %v325, 7
    %v327 = vsub.s32 2, %v326
    %v328 = vrot.slane %v82, %v327
    %v329 = vlaneseq
    %v330 = vshrl.u32 %v329, 7
    %v331 = vsub.s32 3, %v330
    %v332 = vrot.slane %v82, %v331
    %v337 = vmul.f32 %v314, %v320
    %v338 = vmul.f32 %v313, %v324
    %v339 = vmul.f32 %v312, %v328
    %v340 = vmul.f32 %v315, %v332
    %341 = vrot.lane.b32.xlu0 %v107, 112
    %v342 = vpop.permute.xlu0 %341
    %343 = vrot.lane.b32.xlu0 %v108, 112
    %v344 = vpop.permute.xlu0 %343
    %345 = vrot.lane.b32.xlu0 %v109, 112
    %v346 = vpop.permute.xlu0 %345
    %347 = vrot.lane.b32.xlu0 %v110, 112
    %v348 = vpop.permute.xlu0 %347
    %vm349 = vcmp.lt.s32.totalorder %v120, 112
    %v350 = vsel %vm349, %v346, %v348
    %v351 = vsel %vm349, %v344, %v346
    %v352 = vsel %vm349, %v342, %v344
    %v353 = vsel %vm349, %v348, %v342
    %v355 = vlaneseq
    %v356 = vshrl.u32 %v355, 7
    %v357 = vsub.s32 0, %v356
    %v358 = vrot.slane %v84, %v357
    %v359 = vlaneseq
    %v360 = vshrl.u32 %v359, 7
    %v361 = vsub.s32 1, %v360
    %v362 = vrot.slane %v84, %v361
    %v363 = vlaneseq
    %v364 = vshrl.u32 %v363, 7
    %v365 = vsub.s32 2, %v364
    %v366 = vrot.slane %v84, %v365
    %v367 = vlaneseq
    %v368 = vshrl.u32 %v367, 7
    %v369 = vsub.s32 3, %v368
    %v370 = vrot.slane %v84, %v369
    %v375 = vmul.f32 %v352, %v358
    %v376 = vmul.f32 %v351, %v362
    %v377 = vmul.f32 %v350, %v366
    %v378 = vmul.f32 %v353, %v370
    %379 = vrot.lane.b32.xlu0 %v107, 111
    %v380 = vpop.permute.xlu0 %379
    %381 = vrot.lane.b32.xlu0 %v108, 111
    %v382 = vpop.permute.xlu0 %381
    %383 = vrot.lane.b32.xlu0 %v109, 111
    %v384 = vpop.permute.xlu0 %383
    %385 = vrot.lane.b32.xlu0 %v110, 111
    %v386 = vpop.permute.xlu0 %385
    %vm387 = vcmp.lt.s32.totalorder %v120, 111
    %v388 = vsel %vm387, %v384, %v386
    %v389 = vsel %vm387, %v382, %v384
    %v390 = vsel %vm387, %v380, %v382
    %v391 = vsel %vm387, %v386, %v380
    %v393 = vlaneseq
    %v394 = vshrl.u32 %v393, 7
    %v395 = vsub.s32 0, %v394
    %v396 = vrot.slane %v86, %v395
    %v397 = vlaneseq
    %v398 = vshrl.u32 %v397, 7
    %v399 = vsub.s32 1, %v398
    %v400 = vrot.slane %v86, %v399
    %v401 = vlaneseq
    %v402 = vshrl.u32 %v401, 7
    %v403 = vsub.s32 2, %v402
    %v404 = vrot.slane %v86, %v403
    %v405 = vlaneseq
    %v406 = vshrl.u32 %v405, 7
    %v407 = vsub.s32 3, %v406
    %v408 = vrot.slane %v86, %v407
    %v413 = vmul.f32 %v390, %v396
    %v414 = vmul.f32 %v389, %v400
    %v415 = vmul.f32 %v388, %v404
    %v416 = vmul.f32 %v391, %v408
    %v417 = vld [vmem:[#allocation5] sm:$0xff]
    %v418 = vld [vmem:[%s5] sm:$0xff]
    %420 = vset.pattern.permute.xlu0 0
    %421 = vperm.xlu0 %420, %v418
    %v422 = vpop.permute.xlu0 %421
    %vm424 = vcmask 588800
    %v426 = vsel %vm424, %v417, 0
    %428 = vmatprep.subr.mxu0 0.0
    %429 = vmatpush1.msra.mxu0 0.0
    %430 = vmatprep.subr.mxu0 0.0
    %431 = vmatpush1.msra.mxu0 0.0
    %432 = vmatprep.subr.mxu0 0.0
    %433 = vmatpush1.msra.mxu0 0.0
    %434 = vmatprep.subr.mxu0 0.0
    %435 = vmatpush1.msra.mxu0 0.0
    %436 = vmatprep.subr.mxu0 0.0
    %437 = vmatpush1.msra.mxu0 0.0
    %438 = vmatprep.subr.mxu0 0.0
    %439 = vmatpush1.msra.mxu0 0.0
    %440 = vmatprep.subr.mxu0 0.0
    %441 = vmatpush1.msra.mxu0 0.0
    %442 = vmatprep.subr.mxu0 %v414
    %443 = vmatpush1.msra.mxu0 %v413
    %444 = vmatprep.subr.mxu0 %v376
    %445 = vmatpush1.msra.mxu0 %v375
    %446 = vmatprep.subr.mxu0 %v338
    %447 = vmatpush1.msra.mxu0 %v337
    %448 = vmatprep.subr.mxu0 %v300
    %449 = vmatpush1.msra.mxu0 %v299
    %450 = vmatprep.subr.mxu0 %v108
    %451 = vmatpush1.msra.mxu0 %v107
    %452 = vmatprep.subr.mxu0 %v262
    %453 = vmatpush1.msra.mxu0 %v261
    %454 = vmatprep.subr.mxu0 %v224
    %455 = vmatpush1.msra.mxu0 %v223
    %456 = vmatprep.subr.mxu0 %v186
    %457 = vmatpush1.msra.mxu0 %v185
    %458 = vmatprep.subr.mxu0 %v148
    %459 = vmatpush1.msra.mxu0 %v147
    %460 = vmatprep.subr.mxu0 0.0
    %461 = vmatpush2.msra.mxu0 0.0
    %462 = vmatprep.subr.mxu0 0.0
    %463 = vmatpush2.msra.mxu0 0.0
    %464 = vmatprep.subr.mxu0 0.0
    %465 = vmatpush2.msra.mxu0 0.0
    %466 = vmatprep.subr.mxu0 0.0
    %467 = vmatpush2.msra.mxu0 0.0
    %468 = vmatprep.subr.mxu0 0.0
    %469 = vmatpush2.msra.mxu0 0.0
    %470 = vmatprep.subr.mxu0 0.0
    %471 = vmatpush2.msra.mxu0 0.0
    %472 = vmatprep.subr.mxu0 0.0
    %473 = vmatpush2.msra.mxu0 0.0
    %474 = vmatprep.subr.mxu0 0.0
    %475 = vmatpush2.msra.mxu0 0.0
    %476 = vmatprep.subr.mxu0 0.0
    %477 = vmatpush2.msra.mxu0 0.0
    %478 = vmatprep.subr.mxu0 0.0
    %479 = vmatpush2.msra.mxu0 0.0
    %480 = vmatprep.subr.mxu0 0.0
    %481 = vmatpush2.msra.mxu0 0.0
    %482 = vmatprep.subr.mxu0 0.0
    %483 = vmatpush2.msra.mxu0 0.0
    %484 = vmatprep.subr.mxu0 0.0
    %485 = vmatpush2.msra.mxu0 0.0
    %486 = vmatprep.subr.mxu0 0.0
    %487 = vmatpush2.msra.mxu0 0.0
    %488 = vmatprep.subr.mxu0 0.0
    %489 = vmatpush2.msra.mxu0 0.0
    %490 = vmatprep.subr.mxu0 0.0
    %491 = vmatpush2.msra.mxu0 0.0
    %492 = vmatprep.mubr.f32.mxu0 0.0
    %493 = vmatmul.mubr.f32.gmra.mxu0 %v426
    %v494 = vpop.f32.mrf.mxu0
    %v495 = vadd.f32 %v422, %v494
    %v496 = vpop.f32.mrf.mxu0
    %v497 = vadd.f32 %v422, %v496
    %498 = vdwg.mxu0
    %499 = vmatprep.subr.mxu0 0.0
    %500 = vmatpush1.msra.mxu0 0.0
    %501 = vmatprep.subr.mxu0 0.0
    %502 = vmatpush1.msra.mxu0 0.0
    %503 = vmatprep.subr.mxu0 0.0
    %504 = vmatpush1.msra.mxu0 0.0
    %505 = vmatprep.subr.mxu0 0.0
    %506 = vmatpush1.msra.mxu0 0.0
    %507 = vmatprep.subr.mxu0 0.0
    %508 = vmatpush1.msra.mxu0 0.0
    %509 = vmatprep.subr.mxu0 0.0
    %510 = vmatpush1.msra.mxu0 0.0
    %511 = vmatprep.subr.mxu0 0.0
    %512 = vmatpush1.msra.mxu0 0.0
    %513 = vmatprep.subr.mxu0 %v416
    %514 = vmatpush1.msra.mxu0 %v415
    %515 = vmatprep.subr.mxu0 %v378
    %516 = vmatpush1.msra.mxu0 %v377
    %517 = vmatprep.subr.mxu0 %v340
    %518 = vmatpush1.msra.mxu0 %v339
    %519 = vmatprep.subr.mxu0 %v302
    %520 = vmatpush1.msra.mxu0 %v301
    %521 = vmatprep.subr.mxu0 %v110
    %522 = vmatpush1.msra.mxu0 %v109
    %523 = vmatprep.subr.mxu0 %v264
    %524 = vmatpush1.msra.mxu0 %v263
    %525 = vmatprep.subr.mxu0 %v226
    %526 = vmatpush1.msra.mxu0 %v225
    %527 = vmatprep.subr.mxu0 %v188
    %528 = vmatpush1.msra.mxu0 %v187
    %529 = vmatprep.subr.mxu0 %v150
    %530 = vmatpush1.msra.mxu0 %v149
    %531 = vmatprep.subr.mxu0 0.0
    %532 = vmatpush2.msra.mxu0 0.0
    %533 = vmatprep.subr.mxu0 0.0
    %534 = vmatpush2.msra.mxu0 0.0
    %535 = vmatprep.subr.mxu0 0.0
    %536 = vmatpush2.msra.mxu0 0.0
    %537 = vmatprep.subr.mxu0 0.0
    %538 = vmatpush2.msra.mxu0 0.0
    %539 = vmatprep.subr.mxu0 0.0
    %540 = vmatpush2.msra.mxu0 0.0
    %541 = vmatprep.subr.mxu0 0.0
    %542 = vmatpush2.msra.mxu0 0.0
    %543 = vmatprep.subr.mxu0 0.0
    %544 = vmatpush2.msra.mxu0 0.0
    %545 = vmatprep.subr.mxu0 0.0
    %546 = vmatpush2.msra.mxu0 0.0
    %547 = vmatprep.subr.mxu0 0.0
    %548 = vmatpush2.msra.mxu0 0.0
    %549 = vmatprep.subr.mxu0 0.0
    %550 = vmatpush2.msra.mxu0 0.0
    %551 = vmatprep.subr.mxu0 0.0
    %552 = vmatpush2.msra.mxu0 0.0
    %553 = vmatprep.subr.mxu0 0.0
    %554 = vmatpush2.msra.mxu0 0.0
    %555 = vmatprep.subr.mxu0 0.0
    %556 = vmatpush2.msra.mxu0 0.0
    %557 = vmatprep.subr.mxu0 0.0
    %558 = vmatpush2.msra.mxu0 0.0
    %559 = vmatprep.subr.mxu0 0.0
    %560 = vmatpush2.msra.mxu0 0.0
    %561 = vmatprep.subr.mxu0 0.0
    %562 = vmatpush2.msra.mxu0 0.0
    %563 = vmatprep.mubr.f32.mxu0 0.0
    %564 = vmatmul.mubr.f32.gmra.mxu0 %v426
    %v565 = vpop.f32.mrf.mxu0
    %v566 = vadd.f32 %v422, %v565
    %v567 = vpop.f32.mrf.mxu0
    %v568 = vadd.f32 %v422, %v567
    %569 = vdwg.mxu0
    %v570 = vmax.f32 %v495, 0.0
    %v571 = vmax.f32 %v497, 0.0
    %v572 = vmax.f32 %v566, 0.0
    %v573 = vmax.f32 %v568, 0.0
    %574 = vrot.lane.b32.xlu0 %v570, 17
    %v575 = vpop.permute.xlu0 %574
    %576 = vrot.lane.b32.xlu0 %v571, 17
    %v577 = vpop.permute.xlu0 %576
    %578 = vrot.lane.b32.xlu0 %v572, 17
    %v579 = vpop.permute.xlu0 %578
    %580 = vrot.lane.b32.xlu0 %v573, 17
    %v581 = vpop.permute.xlu0 %580
    %v582 = vsel %vm121, %v579, %v581
    %v583 = vsel %vm121, %v577, %v579
    %v584 = vsel %vm121, %v575, %v577
    %v585 = vsel %vm121, %v581, %v575
    %v586 = vmul.f32 %v585, %v130
    %v587 = vmul.f32 %v584, %v134
    %v588 = vmul.f32 %v583, %v138
    %v589 = vmul.f32 %v582, %v142
    %590 = vrot.lane.b32.xlu0 %v570, 16
    %v591 = vpop.permute.xlu0 %590
    %592 = vrot.lane.b32.xlu0 %v571, 16
    %v593 = vpop.permute.xlu0 %592
    %594 = vrot.lane.b32.xlu0 %v572, 16
    %v595 = vpop.permute.xlu0 %594
    %596 = vrot.lane.b32.xlu0 %v573, 16
    %v597 = vpop.permute.xlu0 %596
    %v598 = vsel %vm159, %v595, %v597
    %v599 = vsel %vm159, %v593, %v595
    %v600 = vsel %vm159, %v591, %v593
    %v601 = vsel %vm159, %v597, %v591
    %v602 = vmul.f32 %v601, %v168
    %v603 = vmul.f32 %v600, %v172
    %v604 = vmul.f32 %v599, %v176
    %v605 = vmul.f32 %v598, %v180
    %606 = vrot.lane.b32.xlu0 %v570, 15
    %v607 = vpop.permute.xlu0 %606
    %608 = vrot.lane.b32.xlu0 %v571, 15
    %v609 = vpop.permute.xlu0 %608
    %610 = vrot.lane.b32.xlu0 %v572, 15
    %v611 = vpop.permute.xlu0 %610
    %612 = vrot.lane.b32.xlu0 %v573, 15
    %v613 = vpop.permute.xlu0 %612
    %v614 = vsel %vm197, %v611, %v613
    %v615 = vsel %vm197, %v609, %v611
    %v616 = vsel %vm197, %v607, %v609
    %v617 = vsel %vm197, %v613, %v607
    %v618 = vmul.f32 %v617, %v206
    %v619 = vmul.f32 %v616, %v210
    %v620 = vmul.f32 %v615, %v214
    %v621 = vmul.f32 %v614, %v218
    %622 = vrot.lane.b32.xlu0 %v570, 1
    %v623 = vpop.permute.xlu0 %622
    %624 = vrot.lane.b32.xlu0 %v571, 1
    %v625 = vpop.permute.xlu0 %624
    %626 = vrot.lane.b32.xlu0 %v572, 1
    %v627 = vpop.permute.xlu0 %626
    %628 = vrot.lane.b32.xlu0 %v573, 1
    %v629 = vpop.permute.xlu0 %628
    %v630 = vsel %vm235, %v627, %v629
    %v631 = vsel %vm235, %v625, %v627
    %v632 = vsel %vm235, %v623, %v625
    %v633 = vsel %vm235, %v629, %v623
    %v634 = vmul.f32 %v633, %v244
    %v635 = vmul.f32 %v632, %v248
    %v636 = vmul.f32 %v631, %v252
    %v637 = vmul.f32 %v630, %v256
    %638 = vrot.lane.b32.xlu0 %v570, 127
    %v639 = vpop.permute.xlu0 %638
    %640 = vrot.lane.b32.xlu0 %v571, 127
    %v641 = vpop.permute.xlu0 %640
    %642 = vrot.lane.b32.xlu0 %v572, 127
    %v643 = vpop.permute.xlu0 %642
    %644 = vrot.lane.b32.xlu0 %v573, 127
    %v645 = vpop.permute.xlu0 %644
    %v646 = vsel %vm273, %v643, %v645
    %v647 = vsel %vm273, %v641, %v643
    %v648 = vsel %vm273, %v639, %v641
    %v649 = vsel %vm273, %v645, %v639
    %v650 = vmul.f32 %v648, %v282
    %v651 = vmul.f32 %v647, %v286
    %v652 = vmul.f32 %v646, %v290
    %v653 = vmul.f32 %v649, %v294
    %654 = vrot.lane.b32.xlu0 %v570, 113
    %v655 = vpop.permute.xlu0 %654
    %656 = vrot.lane.b32.xlu0 %v571, 113
    %v657 = vpop.permute.xlu0 %656
    %658 = vrot.lane.b32.xlu0 %v572, 113
    %v659 = vpop.permute.xlu0 %658
    %660 = vrot.lane.b32.xlu0 %v573, 113
    %v661 = vpop.permute.xlu0 %660
    %v662 = vsel %vm311, %v659, %v661
    %v663 = vsel %vm311, %v657, %v659
    %v664 = vsel %vm311, %v655, %v657
    %v665 = vsel %vm311, %v661, %v655
    %v666 = vmul.f32 %v664, %v320
    %v667 = vmul.f32 %v663, %v324
    %v668 = vmul.f32 %v662, %v328
    %v669 = vmul.f32 %v665, %v332
    %670 = vrot.lane.b32.xlu0 %v570, 112
    %v671 = vpop.permute.xlu0 %670
    %672 = vrot.lane.b32.xlu0 %v571, 112
    %v673 = vpop.permute.xlu0 %672
    %674 = vrot.lane.b32.xlu0 %v572, 112
    %v675 = vpop.permute.xlu0 %674
    %676 = vrot.lane.b32.xlu0 %v573, 112
    %v677 = vpop.permute.xlu0 %676
    %v678 = vsel %vm349, %v675, %v677
    %v679 = vsel %vm349, %v673, %v675
    %v680 = vsel %vm349, %v671, %v673
    %v681 = vsel %vm349, %v677, %v671
    %v682 = vmul.f32 %v680, %v358
    %v683 = vmul.f32 %v679, %v362
    %v684 = vmul.f32 %v678, %v366
    %v685 = vmul.f32 %v681, %v370
    %686 = vrot.lane.b32.xlu0 %v570, 111
    %v687 = vpop.permute.xlu0 %686
    %688 = vrot.lane.b32.xlu0 %v571, 111
    %v689 = vpop.permute.xlu0 %688
    %690 = vrot.lane.b32.xlu0 %v572, 111
    %v691 = vpop.permute.xlu0 %690
    %692 = vrot.lane.b32.xlu0 %v573, 111
    %v693 = vpop.permute.xlu0 %692
    %v694 = vsel %vm387, %v691, %v693
    %v695 = vsel %vm387, %v689, %v691
    %v696 = vsel %vm387, %v687, %v689
    %v697 = vsel %vm387, %v693, %v687
    %v698 = vmul.f32 %v696, %v396
    %v699 = vmul.f32 %v695, %v400
    %v700 = vmul.f32 %v694, %v404
    %v701 = vmul.f32 %v697, %v408
    %v702 = vld [vmem:[%s6] sm:$0xff]
    %v703 = vld [vmem:[#allocation7] sm:$0xff]
    %vm704 = vcmask 64512
    %v706 = vsel %vm704, %v703, 0
    %708 = vmatprep.subr.mxu0 0.0
    %709 = vmatpush1.msra.mxu0 0.0
    %710 = vmatprep.subr.mxu0 0.0
    %711 = vmatpush1.msra.mxu0 0.0
    %712 = vmatprep.subr.mxu0 0.0
    %713 = vmatpush1.msra.mxu0 0.0
    %714 = vmatprep.subr.mxu0 0.0
    %715 = vmatpush1.msra.mxu0 0.0
    %716 = vmatprep.subr.mxu0 0.0
    %717 = vmatpush1.msra.mxu0 0.0
    %718 = vmatprep.subr.mxu0 0.0
    %719 = vmatpush1.msra.mxu0 0.0
    %720 = vmatprep.subr.mxu0 0.0
    %721 = vmatpush1.msra.mxu0 0.0
    %722 = vmatprep.subr.mxu0 0.0
    %723 = vmatpush1.msra.mxu0 0.0
    %724 = vmatprep.subr.mxu0 0.0
    %725 = vmatpush1.msra.mxu0 0.0
    %726 = vmatprep.subr.mxu0 0.0
    %727 = vmatpush1.msra.mxu0 0.0
    %728 = vmatprep.subr.mxu0 0.0
    %729 = vmatpush1.msra.mxu0 0.0
    %730 = vmatprep.subr.mxu0 0.0
    %731 = vmatpush1.msra.mxu0 0.0
    %732 = vmatprep.subr.mxu0 0.0
    %733 = vmatpush1.msra.mxu0 0.0
    %734 = vmatprep.subr.mxu0 0.0
    %735 = vmatpush1.msra.mxu0 0.0
    %736 = vmatprep.subr.mxu0 0.0
    %737 = vmatpush1.msra.mxu0 0.0
    %738 = vmatprep.subr.mxu0 %v69
    %739 = vmatpush1.msra.mxu0 %v68
    %740 = vmatprep.subr.mxu0 0.0
    %741 = vmatpush2.msra.mxu0 0.0
    %742 = vmatprep.subr.mxu0 0.0
    %743 = vmatpush2.msra.mxu0 0.0
    %744 = vmatprep.subr.mxu0 0.0
    %745 = vmatpush2.msra.mxu0 0.0
    %746 = vmatprep.subr.mxu0 0.0
    %747 = vmatpush2.msra.mxu0 0.0
    %748 = vmatprep.subr.mxu0 0.0
    %749 = vmatpush2.msra.mxu0 0.0
    %750 = vmatprep.subr.mxu0 0.0
    %751 = vmatpush2.msra.mxu0 0.0
    %752 = vmatprep.subr.mxu0 0.0
    %753 = vmatpush2.msra.mxu0 0.0
    %754 = vmatprep.subr.mxu0 0.0
    %755 = vmatpush2.msra.mxu0 0.0
    %756 = vmatprep.subr.mxu0 0.0
    %757 = vmatpush2.msra.mxu0 0.0
    %758 = vmatprep.subr.mxu0 0.0
    %759 = vmatpush2.msra.mxu0 0.0
    %760 = vmatprep.subr.mxu0 0.0
    %761 = vmatpush2.msra.mxu0 0.0
    %762 = vmatprep.subr.mxu0 0.0
    %763 = vmatpush2.msra.mxu0 0.0
    %764 = vmatprep.subr.mxu0 0.0
    %765 = vmatpush2.msra.mxu0 0.0
    %766 = vmatprep.subr.mxu0 0.0
    %767 = vmatpush2.msra.mxu0 0.0
    %768 = vmatprep.subr.mxu0 0.0
    %769 = vmatpush2.msra.mxu0 0.0
    %770 = vmatprep.subr.mxu0 0.0
    %771 = vmatpush2.msra.mxu0 0.0
    %772 = vmatprep.mubr.f32.mxu0 0.0
    %773 = vmatmul.mubr.f32.gmra.mxu0 %v706
    %v774 = vpop.f32.mrf.mxu0
    %v775 = vadd.f32 0.0, %v774
    %v776 = vpop.f32.mrf.mxu0
    %v777 = vadd.f32 0.0, %v776
    %778 = vdwg.mxu0
    %779 = vmatprep.subr.mxu0 0.0
    %780 = vmatpush1.msra.mxu0 0.0
    %781 = vmatprep.subr.mxu0 0.0
    %782 = vmatpush1.msra.mxu0 0.0
    %783 = vmatprep.subr.mxu0 0.0
    %784 = vmatpush1.msra.mxu0 0.0
    %785 = vmatprep.subr.mxu0 0.0
    %786 = vmatpush1.msra.mxu0 0.0
    %787 = vmatprep.subr.mxu0 0.0
    %788 = vmatpush1.msra.mxu0 0.0
    %789 = vmatprep.subr.mxu0 0.0
    %790 = vmatpush1.msra.mxu0 0.0
    %791 = vmatprep.subr.mxu0 0.0
    %792 = vmatpush1.msra.mxu0 0.0
    %793 = vmatprep.subr.mxu0 0.0
    %794 = vmatpush1.msra.mxu0 0.0
    %795 = vmatprep.subr.mxu0 0.0
    %796 = vmatpush1.msra.mxu0 0.0
    %797 = vmatprep.subr.mxu0 0.0
    %798 = vmatpush1.msra.mxu0 0.0
    %799 = vmatprep.subr.mxu0 0.0
    %800 = vmatpush1.msra.mxu0 0.0
    %801 = vmatprep.subr.mxu0 0.0
    %802 = vmatpush1.msra.mxu0 0.0
    %803 = vmatprep.subr.mxu0 0.0
    %804 = vmatpush1.msra.mxu0 0.0
    %805 = vmatprep.subr.mxu0 0.0
    %806 = vmatpush1.msra.mxu0 0.0
    %807 = vmatprep.subr.mxu0 0.0
    %808 = vmatpush1.msra.mxu0 0.0
    %809 = vmatprep.subr.mxu0 %v71
    %810 = vmatpush1.msra.mxu0 %v70
    %811 = vmatprep.subr.mxu0 0.0
    %812 = vmatpush2.msra.mxu0 0.0
    %813 = vmatprep.subr.mxu0 0.0
    %814 = vmatpush2.msra.mxu0 0.0
    %815 = vmatprep.subr.mxu0 0.0
    %816 = vmatpush2.msra.mxu0 0.0
    %817 = vmatprep.subr.mxu0 0.0
    %818 = vmatpush2.msra.mxu0 0.0
    %819 = vmatprep.subr.mxu0 0.0
    %820 = vmatpush2.msra.mxu0 0.0
    %821 = vmatprep.subr.mxu0 0.0
    %822 = vmatpush2.msra.mxu0 0.0
    %823 = vmatprep.subr.mxu0 0.0
    %824 = vmatpush2.msra.mxu0 0.0
    %825 = vmatprep.subr.mxu0 0.0
    %826 = vmatpush2.msra.mxu0 0.0
    %827 = vmatprep.subr.mxu0 0.0
    %828 = vmatpush2.msra.mxu0 0.0
    %829 = vmatprep.subr.mxu0 0.0
    %830 = vmatpush2.msra.mxu0 0.0
    %831 = vmatprep.subr.mxu0 0.0
    %832 = vmatpush2.msra.mxu0 0.0
    %833 = vmatprep.subr.mxu0 0.0
    %834 = vmatpush2.msra.mxu0 0.0
    %835 = vmatprep.subr.mxu0 0.0
    %836 = vmatpush2.msra.mxu0 0.0
    %837 = vmatprep.subr.mxu0 0.0
    %838 = vmatpush2.msra.mxu0 0.0
    %839 = vmatprep.subr.mxu0 0.0
    %840 = vmatpush2.msra.mxu0 0.0
    %841 = vmatprep.subr.mxu0 0.0
    %842 = vmatpush2.msra.mxu0 0.0
    %843 = vmatprep.mubr.f32.mxu0 0.0
    %844 = vmatmul.mubr.f32.gmra.mxu0 %v706
    %v845 = vpop.f32.mrf.mxu0
    %v846 = vadd.f32 0.0, %v845
    %v847 = vpop.f32.mrf.mxu0
    %v848 = vadd.f32 0.0, %v847
    %849 = vdwg.mxu0
    %v851 = vsel %vm424, %v702, 0
    %853 = vmatprep.subr.mxu0 0.0
    %854 = vmatpush1.msra.mxu0 0.0
    %855 = vmatprep.subr.mxu0 0.0
    %856 = vmatpush1.msra.mxu0 0.0
    %857 = vmatprep.subr.mxu0 0.0
    %858 = vmatpush1.msra.mxu0 0.0
    %859 = vmatprep.subr.mxu0 0.0
    %860 = vmatpush1.msra.mxu0 0.0
    %861 = vmatprep.subr.mxu0 0.0
    %862 = vmatpush1.msra.mxu0 0.0
    %863 = vmatprep.subr.mxu0 0.0
    %864 = vmatpush1.msra.mxu0 0.0
    %865 = vmatprep.subr.mxu0 0.0
    %866 = vmatpush1.msra.mxu0 0.0
    %867 = vmatprep.subr.mxu0 %v699
    %868 = vmatpush1.msra.mxu0 %v698
    %869 = vmatprep.subr.mxu0 %v683
    %870 = vmatpush1.msra.mxu0 %v682
    %871 = vmatprep.subr.mxu0 %v667
    %872 = vmatpush1.msra.mxu0 %v666
    %873 = vmatprep.subr.mxu0 %v651
    %874 = vmatpush1.msra.mxu0 %v650
    %875 = vmatprep.subr.mxu0 %v571
    %876 = vmatpush1.msra.mxu0 %v570
    %877 = vmatprep.subr.mxu0 %v635
    %878 = vmatpush1.msra.mxu0 %v634
    %879 = vmatprep.subr.mxu0 %v619
    %880 = vmatpush1.msra.mxu0 %v618
    %881 = vmatprep.subr.mxu0 %v603
    %882 = vmatpush1.msra.mxu0 %v602
    %883 = vmatprep.subr.mxu0 %v587
    %884 = vmatpush1.msra.mxu0 %v586
    %885 = vmatprep.subr.mxu0 0.0
    %886 = vmatpush2.msra.mxu0 0.0
    %887 = vmatprep.subr.mxu0 0.0
    %888 = vmatpush2.msra.mxu0 0.0
    %889 = vmatprep.subr.mxu0 0.0
    %890 = vmatpush2.msra.mxu0 0.0
    %891 = vmatprep.subr.mxu0 0.0
    %892 = vmatpush2.msra.mxu0 0.0
    %893 = vmatprep.subr.mxu0 0.0
    %894 = vmatpush2.msra.mxu0 0.0
    %895 = vmatprep.subr.mxu0 0.0
    %896 = vmatpush2.msra.mxu0 0.0
    %897 = vmatprep.subr.mxu0 0.0
    %898 = vmatpush2.msra.mxu0 0.0
    %899 = vmatprep.subr.mxu0 0.0
    %900 = vmatpush2.msra.mxu0 0.0
    %901 = vmatprep.subr.mxu0 0.0
    %902 = vmatpush2.msra.mxu0 0.0
    %903 = vmatprep.subr.mxu0 0.0
    %904 = vmatpush2.msra.mxu0 0.0
    %905 = vmatprep.subr.mxu0 0.0
    %906 = vmatpush2.msra.mxu0 0.0
    %907 = vmatprep.subr.mxu0 0.0
    %908 = vmatpush2.msra.mxu0 0.0
    %909 = vmatprep.subr.mxu0 0.0
    %910 = vmatpush2.msra.mxu0 0.0
    %911 = vmatprep.subr.mxu0 0.0
    %912 = vmatpush2.msra.mxu0 0.0
    %913 = vmatprep.subr.mxu0 0.0
    %914 = vmatpush2.msra.mxu0 0.0
    %915 = vmatprep.subr.mxu0 0.0
    %916 = vmatpush2.msra.mxu0 0.0
    %917 = vmatprep.mubr.f32.mxu0 0.0
    %918 = vmatmul.mubr.f32.gmra.mxu0 %v851
    %v919 = vpop.f32.mrf.mxu0
    %v920 = vadd.f32 %v775, %v919
    %v921 = vpop.f32.mrf.mxu0
    %v922 = vadd.f32 %v777, %v921
    %923 = vdwg.mxu0
    %924 = vmatprep.subr.mxu0 0.0
    %925 = vmatpush1.msra.mxu0 0.0
    %926 = vmatprep.subr.mxu0 0.0
    %927 = vmatpush1.msra.mxu0 0.0
    %928 = vmatprep.subr.mxu0 0.0
    %929 = vmatpush1.msra.mxu0 0.0
    %930 = vmatprep.subr.mxu0 0.0
    %931 = vmatpush1.msra.mxu0 0.0
    %932 = vmatprep.subr.mxu0 0.0
    %933 = vmatpush1.msra.mxu0 0.0
    %934 = vmatprep.subr.mxu0 0.0
    %935 = vmatpush1.msra.mxu0 0.0
    %936 = vmatprep.subr.mxu0 0.0
    %937 = vmatpush1.msra.mxu0 0.0
    %938 = vmatprep.subr.mxu0 %v701
    %939 = vmatpush1.msra.mxu0 %v700
    %940 = vmatprep.subr.mxu0 %v685
    %941 = vmatpush1.msra.mxu0 %v684
    %942 = vmatprep.subr.mxu0 %v669
    %943 = vmatpush1.msra.mxu0 %v668
    %944 = vmatprep.subr.mxu0 %v653
    %945 = vmatpush1.msra.mxu0 %v652
    %946 = vmatprep.subr.mxu0 %v573
    %947 = vmatpush1.msra.mxu0 %v572
    %948 = vmatprep.subr.mxu0 %v637
    %949 = vmatpush1.msra.mxu0 %v636
    %950 = vmatprep.subr.mxu0 %v621
    %951 = vmatpush1.msra.mxu0 %v620
    %952 = vmatprep.subr.mxu0 %v605
    %953 = vmatpush1.msra.mxu0 %v604
    %954 = vmatprep.subr.mxu0 %v589
    %955 = vmatpush1.msra.mxu0 %v588
    %956 = vmatprep.subr.mxu0 0.0
    %957 = vmatpush2.msra.mxu0 0.0
    %958 = vmatprep.subr.mxu0 0.0
    %959 = vmatpush2.msra.mxu0 0.0
    %960 = vmatprep.subr.mxu0 0.0
    %961 = vmatpush2.msra.mxu0 0.0
    %962 = vmatprep.subr.mxu0 0.0
    %963 = vmatpush2.msra.mxu0 0.0
    %964 = vmatprep.subr.mxu0 0.0
    %965 = vmatpush2.msra.mxu0 0.0
    %966 = vmatprep.subr.mxu0 0.0
    %967 = vmatpush2.msra.mxu0 0.0
    %968 = vmatprep.subr.mxu0 0.0
    %969 = vmatpush2.msra.mxu0 0.0
    %970 = vmatprep.subr.mxu0 0.0
    %971 = vmatpush2.msra.mxu0 0.0
    %972 = vmatprep.subr.mxu0 0.0
    %973 = vmatpush2.msra.mxu0 0.0
    %974 = vmatprep.subr.mxu0 0.0
    %975 = vmatpush2.msra.mxu0 0.0
    %976 = vmatprep.subr.mxu0 0.0
    %977 = vmatpush2.msra.mxu0 0.0
    %978 = vmatprep.subr.mxu0 0.0
    %979 = vmatpush2.msra.mxu0 0.0
    %980 = vmatprep.subr.mxu0 0.0
    %981 = vmatpush2.msra.mxu0 0.0
    %982 = vmatprep.subr.mxu0 0.0
    %983 = vmatpush2.msra.mxu0 0.0
    %984 = vmatprep.subr.mxu0 0.0
    %985 = vmatpush2.msra.mxu0 0.0
    %986 = vmatprep.subr.mxu0 0.0
    %987 = vmatpush2.msra.mxu0 0.0
    %988 = vmatprep.mubr.f32.mxu0 0.0
    %989 = vmatmul.mubr.f32.gmra.mxu0 %v851
    %v990 = vpop.f32.mrf.mxu0
    %v991 = vadd.f32 %v846, %v990
    %v992 = vpop.f32.mrf.mxu0
    %v993 = vadd.f32 %v848, %v992
    %994 = vdwg.mxu0
    %v995 = vld [vmem:[%s8] sm:$0xff]
    %997 = vset.pattern.permute.xlu0 0
    %998 = vperm.xlu0 %997, %v995
    %v999 = vpop.permute.xlu0 %998
    %v1001 = vadd.f32 %v920, %v999
    %v1002 = vadd.f32 %v922, %v999
    %v1003 = vadd.f32 %v991, %v999
    %v1004 = vadd.f32 %v993, %v999
    %1005 = vst [vmem:[#allocation8] sm:$0xff] %v1001
    %1006 = vst [vmem:[#allocation8 + $0x8] sm:$0xff] %v1002
    %1007 = vst [vmem:[#allocation8 + $0x10] sm:$0xff] %v1003
    %1008 = vst [vmem:[#allocation8 + $0x18] sm:$0xff] %v1004
    // Predicated region
    $region50: #{tpu_custom_call.1} parent=1 // pred_check
      _
    $region51: #{tpu_custom_call.1} parent=1 // pred_check_branch
      %1010 = sbr.rel (0) target = $region53
    $region52: #{tpu_custom_call.1} parent=1 // pred_region
      %s1012 = ssub.s32 512, 512
      %1013 = vsyncadd [#allocation4], %s1012
      %s1015 = sshll.u32 [#allocation8], 4
      %s1016 = int_to_ptr.vmem [resolvable:$true] %s1015
      %1018 = dma.vmem_to_hbm [thread:$0]  %s1016, 512, %s9, [#allocation4]
    $region53: #{tpu_custom_call.1} parent=1 // pred_fallthru
      _
    // Predicated region
    $region54: #{tpu_custom_call.1} parent=1 // pred_check
      _
    $region55: #{tpu_custom_call.1} parent=1 // pred_check_branch
      %1020 = sbr.rel (0) target = $region57
    $region56: #{tpu_custom_call.1} parent=1 // pred_region
      %1021 = dma.done [#allocation4], 512
    $region57: #{tpu_custom_call.1} parent=1 // pred_fallthru
      _
    %1022 = vsyncpa [#allocation3], 1
    %1023 = vsyncpa [#allocation6], 1
    %1024 = vsyncpa [#allocation4], 1

</llo_original>
